<compile_context>
chip_gen: v7x
topology: tpu7x:2x2x1
jax: 0.10.0
libtpu: 0.0.40
codegen_flags: <defaults>
</compile_context>

<pallas_src>
import functools

import jax
import jax.numpy as jnp
from jax import lax
from jax.experimental import pallas as pl
from jax.experimental.pallas import tpu as pltpu


def discriminator_kernel(
    x_ref,       # ((T+1)*Bp, 34) bf16  time-major, sublane-padded input (+1 zero time block)
    wxbig_ref,   # (34, 8H)       bf16  encoder folded into LSTM1 input weights,
                 #                      columns interleaved [i1 i2 f1 f2 g1 g2 o1 o2], cell-2 cols = 0
    bbig_ref,    # (1, 8H)        f32   interleaved biases: cell-1 = b1 + enc_b@W_ih1, cell-2 = b2
    wcombo_ref,  # (2H, 8H)       bf16  [[whh1, w_ih2], [0, w_hh2]], gate-interleaved columns
    decw_ref,    # (1, 2H)        f32   decoder row, zero on the cell-1 (h1) lanes
    decb_ref,    # (1, 1)         f32
    out_ref,     # (Bp, 1)        f32
    *, batch_padded: int, hidden_dim: int, seq_len: int,
):
    Bp, H, T = batch_padded, hidden_dim, seq_len
    G = 8 * H

    # One MXU matmul for ALL per-timestep input pre-activations (+ biases).
    addend_all = (jnp.dot(x_ref[...], wxbig_ref[...],
                          preferred_element_type=jnp.float32)
                  + bbig_ref[...])                        # ((T+1)*Bp, 8H) f32

    wcombo = wcombo_ref[...]                              # hoisted out of the recurrence

    # tanh (g) gate lanes inside the interleaved 8H block: [4H, 6H).
    lane = lax.broadcasted_iota(jnp.int32, (Bp, G), 1)
    is_tanh = (lane >= 4 * H) & (lane < 6 * H)
    lane2 = lax.broadcasted_iota(jnp.int32, (Bp, 2 * H), 1)
    cell1_mask = (lane2 < H).astype(jnp.float32)          # zeroes the LSTM2 half

    def activate(gates):
        # Single EUP sigmoid over the whole gate block; tanh via 2*sigmoid(2x)-1
        # (the x2 is pre-folded into the g-gate weight/bias columns on host).
        s = jax.nn.sigmoid(gates)
        act = jnp.where(is_tanh, 2.0 * s - 1.0, s)
        return (act[:, 0:2 * H], act[:, 2 * H:4 * H],
                act[:, 4 * H:6 * H], act[:, 6 * H:8 * H])

    # Prime step (t = 0 of LSTM1): no recurrent contribution, all state is zero;
    # the LSTM2 half of the packed state is zeroed via cell1_mask.
    i, f, g, o = activate(addend_all[0:Bp, :])
    c = (i * g) * cell1_mask                              # packed [c1(0) | 0]
    h = o * jnp.tanh(c)                                   # packed [h1(0) | 0]

    # Fused recurrence: ONE (Bp,2H)@(2H,8H) matmul per step yields BOTH the
    # LSTM1(t+1) recurrent pre-activations and the LSTM2(t) pre-activations.
    for t in range(T):
        combo = jnp.dot(h.astype(jnp.bfloat16), wcombo,
                        preferred_element_type=jnp.float32)        # (Bp, 8H)
        gates = combo + addend_all[(t + 1) * Bp:(t + 2) * Bp, :]   # aligned 8-row slice
        i, f, g, o = activate(gates)
        c = f * c + i * g                                 # -> [c1(t+1) | c2(t)]
        h = o * jnp.tanh(c)                               # -> [h1(t+1) | h2(t)] = next lhs

    # Decoder on h2(T-1): VPU multiply + lane reduce (decw is zero on h1 lanes),
    # avoids a 1-output-lane MXU matmul.
    out_ref[...] = (jnp.sum(h * decw_ref[...], axis=-1, keepdims=True)
                    + decb_ref[...])


def prepare_params(params, hidden_dim):
    """One-time host-side weight folding. Cache the result across forward calls."""
    H = hidden_dim
    (enc_w, enc_b, w_ih1, w_hh1, b1, w_ih2, w_hh2, b2, dec_w, dec_b) = params

    # x2 on the tanh (g) gate so the kernel only needs sigmoid: tanh(x)=2*sigmoid(2x)-1.
    gate_scale = jnp.array([1.0, 1.0, 2.0, 1.0], jnp.float32)[:, None, None]

    def interleave(c1, c2):
        # c1, c2: (4, R, H) per-gate column blocks for cell-1 / cell-2.
        # -> (R, 8H) columns ordered [i1 i2 f1 f2 g1 g2 o1 o2].
        stacked = jnp.stack([c1, c2], axis=1)             # (4, 2, R, H)
        return jnp.transpose(stacked, (2, 0, 1, 3)).reshape(c1.shape[1], 8 * H)

    # Fold the encoder Linear into LSTM1's input projection. Exact: the torch
    # forward has NO activation/dropout between encoder and lstm1.
    wx1 = jnp.einsum('df,kfh->kdh', enc_w, w_ih1)         # (4, 34, H)
    bx1 = jnp.einsum('of,kfh->koh', enc_b, w_ih1) + b1    # (4, 1, H)

    zeros_in = jnp.zeros((4, 34, H), jnp.float32)
    zeros_hh = jnp.zeros((4, H, H), jnp.float32)

    wx_big = interleave(wx1 * gate_scale, zeros_in)       # (34, 8H), cell-2 cols 0
    b_big = interleave(bx1 * gate_scale, b2 * gate_scale)  # (1, 8H)

    w_combo = jnp.concatenate(
        [interleave(w_hh1 * gate_scale, w_ih2 * gate_scale),   # rows fed by h1
         interleave(zeros_hh, w_hh2 * gate_scale)],            # rows fed by h2
        axis=0)                                           # (2H, 8H)

    dec_row = jnp.concatenate(
        [jnp.zeros((1, H), jnp.float32), dec_w.T], axis=1)     # (1, 2H)

    return {
        "wx_big": wx_big.astype(jnp.bfloat16),
        "b_big": b_big.astype(jnp.float32),
        "w_combo": w_combo.astype(jnp.bfloat16),
        "dec_row": dec_row.astype(jnp.float32),
        "dec_b": dec_b.astype(jnp.float32),
    }


def discriminator_forward(x, folded, hidden_dim):
    """x: (B, T, 34) float32 -> (B, 1) float32. Matches torch Discriminator.forward."""
    B, T, F = x.shape
    assert F == 34
    H = hidden_dim
    Bp = ((B + 7) // 8) * 8        # pad batch to full sublanes

    # Time-major, batch-padded, plus one trailing zero time block so the final
    # fused step has an (unused) LSTM1 input slice to add.
    xt = jnp.transpose(x, (1, 0, 2))                      # (T, B, 34)
    xt = jnp.pad(xt, ((0, 1), (0, Bp - B), (0, 0)))       # (T+1, Bp, 34)
    x_flat = xt.reshape((T + 1) * Bp, F).astype(jnp.bfloat16)

    kernel = functools.partial(discriminator_kernel,
                               batch_padded=Bp, hidden_dim=H, seq_len=T)
    vmem = lambda: pl.BlockSpec(memory_space=pltpu.MemorySpace.VMEM)

    # All operands are KB-scale: fully VMEM-resident, single grid point.
    # Do NOT add a grid at this size (each grid step costs ~0.35 us and a
    # second TensorCore has nothing to do at B=2). For real throughput, batch
    # many samples per call so B >= 128 rows.
    out = pl.pallas_call(
        kernel,
        out_shape=jax.ShapeDtypeStruct((Bp, 1), jnp.float32),
        in_specs=[vmem() for _ in range(6)],
        out_specs=vmem(),
    )(x_flat, folded["wx_big"], folded["b_big"], folded["w_combo"],
      folded["dec_row"], folded["dec_b"])
    return out[:B]


def init_params(key, hidden_dim):
    """Deterministic synthetic init (PyTorch-style U(-1/sqrt(fan_in), +))."""
    H = hidden_dim
    ks = jax.random.split(key, 10)

    def u(k, shape, fan_in):
        bound = 1.0 / (fan_in ** 0.5)
        return jax.random.uniform(k, shape, jnp.float32, -bound, bound)

    enc_w = u(ks[0], (34, H), 34)          # Linear(34, H) weight, transposed
    enc_b = u(ks[1], (1, H), 34)
    w_ih1 = u(ks[2], (4, H, H), H)         # LSTMCell1 W_ih (gate-major [i,f,g,o], transposed)
    w_hh1 = u(ks[3], (4, H, H), H)
    b1 = u(ks[4], (4, 1, H), H)            # b_ih + b_hh folded into one bias
    w_ih2 = u(ks[5], (4, H, H), H)
    w_hh2 = u(ks[6], (4, H, H), H)
    b2 = u(ks[7], (4, 1, H), H)
    dec_w = u(ks[8], (H, 1), H)            # Linear(H, 1) weight, transposed
    dec_b = u(ks[9], (1, 1), H)
    return (enc_w, enc_b, w_ih1, w_hh1, b1, w_ih2, w_hh2, b2, dec_w, dec_b)


if __name__ == "__main__":
    key = jax.random.PRNGKey(0)
    H = 32                 # hidden_dim
    B, T, F = 2, 8, 34     # batch, sequence length, fixed input feature dim

    k_x, k_p = jax.random.split(key)
    x = jax.random.normal(k_x, (B, T, F), jnp.float32)
    params = init_params(k_p, H)

    folded = prepare_params(params, H)     # host-side weight folding, done ONCE
    fwd = jax.jit(functools.partial(discriminator_forward, hidden_dim=H))

    out = jax.block_until_ready(fwd(x, folded))
    assert out.shape == (B, 1) and out.dtype == jnp.float32
    assert bool(jnp.all(jnp.isfinite(out)))
    print("KERNEL_OK")
</pallas_src>

<mosaic_0001>
module attributes {stable_mosaic.version = 11 : i64} {
  func.func @discriminator_kernel(%arg0: memref<72x34xbf16, #tpu.memory_space<vmem>>, %arg1: memref<34x256xbf16, #tpu.memory_space<vmem>>, %arg2: memref<1x256xf32, #tpu.memory_space<vmem>>, %arg3: memref<64x256xbf16, #tpu.memory_space<vmem>>, %arg4: memref<1x64xf32, #tpu.memory_space<vmem>>, %arg5: memref<1x1xf32, #tpu.memory_space<vmem>>, %arg6: memref<8x1xf32, #tpu.memory_space<vmem>>) attributes {dimension_semantics = [], scalar_prefetch = 0 : i64, scratch_operands = 0 : i64, tpu.core_type = #tpu.core_type<tc>} {
    %c0 = arith.constant 0 : index
    %c0_0 = arith.constant 0 : index
    %0 = vector.load %arg0[%c0, %c0_0] : memref<72x34xbf16, #tpu.memory_space<vmem>>, vector<72x34xbf16>
    %c0_1 = arith.constant 0 : index
    %c0_2 = arith.constant 0 : index
    %1 = vector.load %arg1[%c0_1, %c0_2] : memref<34x256xbf16, #tpu.memory_space<vmem>>, vector<34x256xbf16>
    %cst = arith.constant dense<0.000000e+00> : vector<72x256xf32>
    %2 = tpu.matmul %0, %1, %cst {dimension_numbers = #tpu.dot_dimension_numbers<[1], [0], [0], [1], [0, 0, 1, 1], [], []>} : vector<72x34xbf16>, vector<34x256xbf16>, vector<72x256xf32> -> vector<72x256xf32>
    %c0_3 = arith.constant 0 : index
    %c0_4 = arith.constant 0 : index
    %3 = vector.load %arg2[%c0_3, %c0_4] : memref<1x256xf32, #tpu.memory_space<vmem>>, vector<1x256xf32>
    %4 = vector.broadcast %3 : vector<1x256xf32> to vector<72x256xf32>
    %5 = arith.addf %2, %4 : vector<72x256xf32>
    %c0_5 = arith.constant 0 : index
    %c0_6 = arith.constant 0 : index
    %6 = vector.load %arg3[%c0_5, %c0_6] : memref<64x256xbf16, #tpu.memory_space<vmem>>, vector<64x256xbf16>
    %7 = tpu.iota {dimensions = array<i32: 1>} : vector<8x256xi32>
    %c128_i32 = arith.constant 128 : i32
    %8 = vector.broadcast %c128_i32 : i32 to vector<8x256xi32>
    %9 = arith.cmpi sge, %7, %8 : vector<8x256xi32>
    %c192_i32 = arith.constant 192 : i32
    %10 = vector.broadcast %c192_i32 : i32 to vector<8x256xi32>
    %11 = arith.cmpi slt, %7, %10 : vector<8x256xi32>
    %12 = arith.andi %9, %11 : vector<8x256xi1>
    %13 = tpu.iota {dimensions = array<i32: 1>} : vector<8x64xi32>
    %c32_i32 = arith.constant 32 : i32
    %14 = vector.broadcast %c32_i32 : i32 to vector<8x64xi32>
    %15 = arith.cmpi slt, %13, %14 : vector<8x64xi32>
    %16 = arith.extui %15 : vector<8x64xi1> to vector<8x64xi32>
    %17 = arith.sitofp %16 : vector<8x64xi32> to vector<8x64xf32>
    %18 = vector.extract_strided_slice %5 {offsets = [0, 0], sizes = [8, 256], strides = [1, 1]} : vector<72x256xf32> to vector<8x256xf32>
    %19 = arith.negf %18 : vector<8x256xf32>
    %20 = math.exp %19 : vector<8x256xf32>
    %cst_7 = arith.constant 1.000000e+00 : f32
    %21 = vector.broadcast %cst_7 : f32 to vector<8x256xf32>
    %22 = arith.addf %21, %20 : vector<8x256xf32>
    %23 = arith.divf %21, %22 : vector<8x256xf32>
    %cst_8 = arith.constant 2.000000e+00 : f32
    %24 = vector.broadcast %cst_8 : f32 to vector<8x256xf32>
    %25 = arith.mulf %24, %23 : vector<8x256xf32>
    %cst_9 = arith.constant 1.000000e+00 : f32
    %26 = vector.broadcast %cst_9 : f32 to vector<8x256xf32>
    %27 = arith.subf %25, %26 : vector<8x256xf32>
    %28 = arith.select %12, %27, %23 : vector<8x256xi1>, vector<8x256xf32>
    %29 = vector.extract_strided_slice %28 {offsets = [0, 0], sizes = [8, 64], strides = [1, 1]} : vector<8x256xf32> to vector<8x64xf32>
    %30 = vector.extract_strided_slice %28 {offsets = [0, 128], sizes = [8, 64], strides = [1, 1]} : vector<8x256xf32> to vector<8x64xf32>
    %31 = vector.extract_strided_slice %28 {offsets = [0, 192], sizes = [8, 64], strides = [1, 1]} : vector<8x256xf32> to vector<8x64xf32>
    %32 = arith.mulf %29, %30 : vector<8x64xf32>
    %33 = arith.mulf %32, %17 : vector<8x64xf32>
    %34 = math.tanh %33 : vector<8x64xf32>
    %35 = arith.mulf %31, %34 : vector<8x64xf32>
    %36 = arith.truncf %35 : vector<8x64xf32> to vector<8x64xbf16>
    %cst_10 = arith.constant dense<0.000000e+00> : vector<8x256xf32>
    %37 = tpu.matmul %36, %6, %cst_10 {dimension_numbers = #tpu.dot_dimension_numbers<[1], [0], [0], [1], [0, 0, 1, 1], [], []>} : vector<8x64xbf16>, vector<64x256xbf16>, vector<8x256xf32> -> vector<8x256xf32>
    %38 = vector.extract_strided_slice %5 {offsets = [8, 0], sizes = [8, 256], strides = [1, 1]} : vector<72x256xf32> to vector<8x256xf32>
    %39 = arith.addf %37, %38 : vector<8x256xf32>
    %40 = arith.negf %39 : vector<8x256xf32>
    %41 = math.exp %40 : vector<8x256xf32>
    %cst_11 = arith.constant 1.000000e+00 : f32
    %42 = vector.broadcast %cst_11 : f32 to vector<8x256xf32>
    %43 = arith.addf %42, %41 : vector<8x256xf32>
    %44 = arith.divf %42, %43 : vector<8x256xf32>
    %cst_12 = arith.constant 2.000000e+00 : f32
    %45 = vector.broadcast %cst_12 : f32 to vector<8x256xf32>
    %46 = arith.mulf %45, %44 : vector<8x256xf32>
    %cst_13 = arith.constant 1.000000e+00 : f32
    %47 = vector.broadcast %cst_13 : f32 to vector<8x256xf32>
    %48 = arith.subf %46, %47 : vector<8x256xf32>
    %49 = arith.select %12, %48, %44 : vector<8x256xi1>, vector<8x256xf32>
    %50 = vector.extract_strided_slice %49 {offsets = [0, 0], sizes = [8, 64], strides = [1, 1]} : vector<8x256xf32> to vector<8x64xf32>
    %51 = vector.extract_strided_slice %49 {offsets = [0, 64], sizes = [8, 64], strides = [1, 1]} : vector<8x256xf32> to vector<8x64xf32>
    %52 = vector.extract_strided_slice %49 {offsets = [0, 128], sizes = [8, 64], strides = [1, 1]} : vector<8x256xf32> to vector<8x64xf32>
    %53 = vector.extract_strided_slice %49 {offsets = [0, 192], sizes = [8, 64], strides = [1, 1]} : vector<8x256xf32> to vector<8x64xf32>
    %54 = arith.mulf %51, %33 : vector<8x64xf32>
    %55 = arith.mulf %50, %52 : vector<8x64xf32>
    %56 = arith.addf %54, %55 : vector<8x64xf32>
    %57 = math.tanh %56 : vector<8x64xf32>
    %58 = arith.mulf %53, %57 : vector<8x64xf32>
    %59 = arith.truncf %58 : vector<8x64xf32> to vector<8x64xbf16>
    %cst_14 = arith.constant dense<0.000000e+00> : vector<8x256xf32>
    %60 = tpu.matmul %59, %6, %cst_14 {dimension_numbers = #tpu.dot_dimension_numbers<[1], [0], [0], [1], [0, 0, 1, 1], [], []>} : vector<8x64xbf16>, vector<64x256xbf16>, vector<8x256xf32> -> vector<8x256xf32>
    %61 = vector.extract_strided_slice %5 {offsets = [16, 0], sizes = [8, 256], strides = [1, 1]} : vector<72x256xf32> to vector<8x256xf32>
    %62 = arith.addf %60, %61 : vector<8x256xf32>
    %63 = arith.negf %62 : vector<8x256xf32>
    %64 = math.exp %63 : vector<8x256xf32>
    %cst_15 = arith.constant 1.000000e+00 : f32
    %65 = vector.broadcast %cst_15 : f32 to vector<8x256xf32>
    %66 = arith.addf %65, %64 : vector<8x256xf32>
    %67 = arith.divf %65, %66 : vector<8x256xf32>
    %cst_16 = arith.constant 2.000000e+00 : f32
    %68 = vector.broadcast %cst_16 : f32 to vector<8x256xf32>
    %69 = arith.mulf %68, %67 : vector<8x256xf32>
    %cst_17 = arith.constant 1.000000e+00 : f32
    %70 = vector.broadcast %cst_17 : f32 to vector<8x256xf32>
    %71 = arith.subf %69, %70 : vector<8x256xf32>
    %72 = arith.select %12, %71, %67 : vector<8x256xi1>, vector<8x256xf32>
    %73 = vector.extract_strided_slice %72 {offsets = [0, 0], sizes = [8, 64], strides = [1, 1]} : vector<8x256xf32> to vector<8x64xf32>
    %74 = vector.extract_strided_slice %72 {offsets = [0, 64], sizes = [8, 64], strides = [1, 1]} : vector<8x256xf32> to vector<8x64xf32>
    %75 = vector.extract_strided_slice %72 {offsets = [0, 128], sizes = [8, 64], strides = [1, 1]} : vector<8x256xf32> to vector<8x64xf32>
    %76 = vector.extract_strided_slice %72 {offsets = [0, 192], sizes = [8, 64], strides = [1, 1]} : vector<8x256xf32> to vector<8x64xf32>
    %77 = arith.mulf %74, %56 : vector<8x64xf32>
    %78 = arith.mulf %73, %75 : vector<8x64xf32>
    %79 = arith.addf %77, %78 : vector<8x64xf32>
    %80 = math.tanh %79 : vector<8x64xf32>
    %81 = arith.mulf %76, %80 : vector<8x64xf32>
    %82 = arith.truncf %81 : vector<8x64xf32> to vector<8x64xbf16>
    %cst_18 = arith.constant dense<0.000000e+00> : vector<8x256xf32>
    %83 = tpu.matmul %82, %6, %cst_18 {dimension_numbers = #tpu.dot_dimension_numbers<[1], [0], [0], [1], [0, 0, 1, 1], [], []>} : vector<8x64xbf16>, vector<64x256xbf16>, vector<8x256xf32> -> vector<8x256xf32>
    %84 = vector.extract_strided_slice %5 {offsets = [24, 0], sizes = [8, 256], strides = [1, 1]} : vector<72x256xf32> to vector<8x256xf32>
    %85 = arith.addf %83, %84 : vector<8x256xf32>
    %86 = arith.negf %85 : vector<8x256xf32>
    %87 = math.exp %86 : vector<8x256xf32>
    %cst_19 = arith.constant 1.000000e+00 : f32
    %88 = vector.broadcast %cst_19 : f32 to vector<8x256xf32>
    %89 = arith.addf %88, %87 : vector<8x256xf32>
    %90 = arith.divf %88, %89 : vector<8x256xf32>
    %cst_20 = arith.constant 2.000000e+00 : f32
    %91 = vector.broadcast %cst_20 : f32 to vector<8x256xf32>
    %92 = arith.mulf %91, %90 : vector<8x256xf32>
    %cst_21 = arith.constant 1.000000e+00 : f32
    %93 = vector.broadcast %cst_21 : f32 to vector<8x256xf32>
    %94 = arith.subf %92, %93 : vector<8x256xf32>
    %95 = arith.select %12, %94, %90 : vector<8x256xi1>, vector<8x256xf32>
    %96 = vector.extract_strided_slice %95 {offsets = [0, 0], sizes = [8, 64], strides = [1, 1]} : vector<8x256xf32> to vector<8x64xf32>
    %97 = vector.extract_strided_slice %95 {offsets = [0, 64], sizes = [8, 64], strides = [1, 1]} : vector<8x256xf32> to vector<8x64xf32>
    %98 = vector.extract_strided_slice %95 {offsets = [0, 128], sizes = [8, 64], strides = [1, 1]} : vector<8x256xf32> to vector<8x64xf32>
    %99 = vector.extract_strided_slice %95 {offsets = [0, 192], sizes = [8, 64], strides = [1, 1]} : vector<8x256xf32> to vector<8x64xf32>
    %100 = arith.mulf %97, %79 : vector<8x64xf32>
    %101 = arith.mulf %96, %98 : vector<8x64xf32>
    %102 = arith.addf %100, %101 : vector<8x64xf32>
    %103 = math.tanh %102 : vector<8x64xf32>
    %104 = arith.mulf %99, %103 : vector<8x64xf32>
    %105 = arith.truncf %104 : vector<8x64xf32> to vector<8x64xbf16>
    %cst_22 = arith.constant dense<0.000000e+00> : vector<8x256xf32>
    %106 = tpu.matmul %105, %6, %cst_22 {dimension_numbers = #tpu.dot_dimension_numbers<[1], [0], [0], [1], [0, 0, 1, 1], [], []>} : vector<8x64xbf16>, vector<64x256xbf16>, vector<8x256xf32> -> vector<8x256xf32>
    %107 = vector.extract_strided_slice %5 {offsets = [32, 0], sizes = [8, 256], strides = [1, 1]} : vector<72x256xf32> to vector<8x256xf32>
    %108 = arith.addf %106, %107 : vector<8x256xf32>
    %109 = arith.negf %108 : vector<8x256xf32>
    %110 = math.exp %109 : vector<8x256xf32>
    %cst_23 = arith.constant 1.000000e+00 : f32
    %111 = vector.broadcast %cst_23 : f32 to vector<8x256xf32>
    %112 = arith.addf %111, %110 : vector<8x256xf32>
    %113 = arith.divf %111, %112 : vector<8x256xf32>
    %cst_24 = arith.constant 2.000000e+00 : f32
    %114 = vector.broadcast %cst_24 : f32 to vector<8x256xf32>
    %115 = arith.mulf %114, %113 : vector<8x256xf32>
    %cst_25 = arith.constant 1.000000e+00 : f32
    %116 = vector.broadcast %cst_25 : f32 to vector<8x256xf32>
    %117 = arith.subf %115, %116 : vector<8x256xf32>
    %118 = arith.select %12, %117, %113 : vector<8x256xi1>, vector<8x256xf32>
    %119 = vector.extract_strided_slice %118 {offsets = [0, 0], sizes = [8, 64], strides = [1, 1]} : vector<8x256xf32> to vector<8x64xf32>
    %120 = vector.extract_strided_slice %118 {offsets = [0, 64], sizes = [8, 64], strides = [1, 1]} : vector<8x256xf32> to vector<8x64xf32>
    %121 = vector.extract_strided_slice %118 {offsets = [0, 128], sizes = [8, 64], strides = [1, 1]} : vector<8x256xf32> to vector<8x64xf32>
    %122 = vector.extract_strided_slice %118 {offsets = [0, 192], sizes = [8, 64], strides = [1, 1]} : vector<8x256xf32> to vector<8x64xf32>
    %123 = arith.mulf %120, %102 : vector<8x64xf32>
    %124 = arith.mulf %119, %121 : vector<8x64xf32>
    %125 = arith.addf %123, %124 : vector<8x64xf32>
    %126 = math.tanh %125 : vector<8x64xf32>
    %127 = arith.mulf %122, %126 : vector<8x64xf32>
    %128 = arith.truncf %127 : vector<8x64xf32> to vector<8x64xbf16>
    %cst_26 = arith.constant dense<0.000000e+00> : vector<8x256xf32>
    %129 = tpu.matmul %128, %6, %cst_26 {dimension_numbers = #tpu.dot_dimension_numbers<[1], [0], [0], [1], [0, 0, 1, 1], [], []>} : vector<8x64xbf16>, vector<64x256xbf16>, vector<8x256xf32> -> vector<8x256xf32>
    %130 = vector.extract_strided_slice %5 {offsets = [40, 0], sizes = [8, 256], strides = [1, 1]} : vector<72x256xf32> to vector<8x256xf32>
    %131 = arith.addf %129, %130 : vector<8x256xf32>
    %132 = arith.negf %131 : vector<8x256xf32>
    %133 = math.exp %132 : vector<8x256xf32>
    %cst_27 = arith.constant 1.000000e+00 : f32
    %134 = vector.broadcast %cst_27 : f32 to vector<8x256xf32>
    %135 = arith.addf %134, %133 : vector<8x256xf32>
    %136 = arith.divf %134, %135 : vector<8x256xf32>
    %cst_28 = arith.constant 2.000000e+00 : f32
    %137 = vector.broadcast %cst_28 : f32 to vector<8x256xf32>
    %138 = arith.mulf %137, %136 : vector<8x256xf32>
    %cst_29 = arith.constant 1.000000e+00 : f32
    %139 = vector.broadcast %cst_29 : f32 to vector<8x256xf32>
    %140 = arith.subf %138, %139 : vector<8x256xf32>
    %141 = arith.select %12, %140, %136 : vector<8x256xi1>, vector<8x256xf32>
    %142 = vector.extract_strided_slice %141 {offsets = [0, 0], sizes = [8, 64], strides = [1, 1]} : vector<8x256xf32> to vector<8x64xf32>
    %143 = vector.extract_strided_slice %141 {offsets = [0, 64], sizes = [8, 64], strides = [1, 1]} : vector<8x256xf32> to vector<8x64xf32>
    %144 = vector.extract_strided_slice %141 {offsets = [0, 128], sizes = [8, 64], strides = [1, 1]} : vector<8x256xf32> to vector<8x64xf32>
    %145 = vector.extract_strided_slice %141 {offsets = [0, 192], sizes = [8, 64], strides = [1, 1]} : vector<8x256xf32> to vector<8x64xf32>
    %146 = arith.mulf %143, %125 : vector<8x64xf32>
    %147 = arith.mulf %142, %144 : vector<8x64xf32>
    %148 = arith.addf %146, %147 : vector<8x64xf32>
    %149 = math.tanh %148 : vector<8x64xf32>
    %150 = arith.mulf %145, %149 : vector<8x64xf32>
    %151 = arith.truncf %150 : vector<8x64xf32> to vector<8x64xbf16>
    %cst_30 = arith.constant dense<0.000000e+00> : vector<8x256xf32>
    %152 = tpu.matmul %151, %6, %cst_30 {dimension_numbers = #tpu.dot_dimension_numbers<[1], [0], [0], [1], [0, 0, 1, 1], [], []>} : vector<8x64xbf16>, vector<64x256xbf16>, vector<8x256xf32> -> vector<8x256xf32>
    %153 = vector.extract_strided_slice %5 {offsets = [48, 0], sizes = [8, 256], strides = [1, 1]} : vector<72x256xf32> to vector<8x256xf32>
    %154 = arith.addf %152, %153 : vector<8x256xf32>
    %155 = arith.negf %154 : vector<8x256xf32>
    %156 = math.exp %155 : vector<8x256xf32>
    %cst_31 = arith.constant 1.000000e+00 : f32
    %157 = vector.broadcast %cst_31 : f32 to vector<8x256xf32>
    %158 = arith.addf %157, %156 : vector<8x256xf32>
    %159 = arith.divf %157, %158 : vector<8x256xf32>
    %cst_32 = arith.constant 2.000000e+00 : f32
    %160 = vector.broadcast %cst_32 : f32 to vector<8x256xf32>
    %161 = arith.mulf %160, %159 : vector<8x256xf32>
    %cst_33 = arith.constant 1.000000e+00 : f32
    %162 = vector.broadcast %cst_33 : f32 to vector<8x256xf32>
    %163 = arith.subf %161, %162 : vector<8x256xf32>
    %164 = arith.select %12, %163, %159 : vector<8x256xi1>, vector<8x256xf32>
    %165 = vector.extract_strided_slice %164 {offsets = [0, 0], sizes = [8, 64], strides = [1, 1]} : vector<8x256xf32> to vector<8x64xf32>
    %166 = vector.extract_strided_slice %164 {offsets = [0, 64], sizes = [8, 64], strides = [1, 1]} : vector<8x256xf32> to vector<8x64xf32>
    %167 = vector.extract_strided_slice %164 {offsets = [0, 128], sizes = [8, 64], strides = [1, 1]} : vector<8x256xf32> to vector<8x64xf32>
    %168 = vector.extract_strided_slice %164 {offsets = [0, 192], sizes = [8, 64], strides = [1, 1]} : vector<8x256xf32> to vector<8x64xf32>
    %169 = arith.mulf %166, %148 : vector<8x64xf32>
    %170 = arith.mulf %165, %167 : vector<8x64xf32>
    %171 = arith.addf %169, %170 : vector<8x64xf32>
    %172 = math.tanh %171 : vector<8x64xf32>
    %173 = arith.mulf %168, %172 : vector<8x64xf32>
    %174 = arith.truncf %173 : vector<8x64xf32> to vector<8x64xbf16>
    %cst_34 = arith.constant dense<0.000000e+00> : vector<8x256xf32>
    %175 = tpu.matmul %174, %6, %cst_34 {dimension_numbers = #tpu.dot_dimension_numbers<[1], [0], [0], [1], [0, 0, 1, 1], [], []>} : vector<8x64xbf16>, vector<64x256xbf16>, vector<8x256xf32> -> vector<8x256xf32>
    %176 = vector.extract_strided_slice %5 {offsets = [56, 0], sizes = [8, 256], strides = [1, 1]} : vector<72x256xf32> to vector<8x256xf32>
    %177 = arith.addf %175, %176 : vector<8x256xf32>
    %178 = arith.negf %177 : vector<8x256xf32>
    %179 = math.exp %178 : vector<8x256xf32>
    %cst_35 = arith.constant 1.000000e+00 : f32
    %180 = vector.broadcast %cst_35 : f32 to vector<8x256xf32>
    %181 = arith.addf %180, %179 : vector<8x256xf32>
    %182 = arith.divf %180, %181 : vector<8x256xf32>
    %cst_36 = arith.constant 2.000000e+00 : f32
    %183 = vector.broadcast %cst_36 : f32 to vector<8x256xf32>
    %184 = arith.mulf %183, %182 : vector<8x256xf32>
    %cst_37 = arith.constant 1.000000e+00 : f32
    %185 = vector.broadcast %cst_37 : f32 to vector<8x256xf32>
    %186 = arith.subf %184, %185 : vector<8x256xf32>
    %187 = arith.select %12, %186, %182 : vector<8x256xi1>, vector<8x256xf32>
    %188 = vector.extract_strided_slice %187 {offsets = [0, 0], sizes = [8, 64], strides = [1, 1]} : vector<8x256xf32> to vector<8x64xf32>
    %189 = vector.extract_strided_slice %187 {offsets = [0, 64], sizes = [8, 64], strides = [1, 1]} : vector<8x256xf32> to vector<8x64xf32>
    %190 = vector.extract_strided_slice %187 {offsets = [0, 128], sizes = [8, 64], strides = [1, 1]} : vector<8x256xf32> to vector<8x64xf32>
    %191 = vector.extract_strided_slice %187 {offsets = [0, 192], sizes = [8, 64], strides = [1, 1]} : vector<8x256xf32> to vector<8x64xf32>
    %192 = arith.mulf %189, %171 : vector<8x64xf32>
    %193 = arith.mulf %188, %190 : vector<8x64xf32>
    %194 = arith.addf %192, %193 : vector<8x64xf32>
    %195 = math.tanh %194 : vector<8x64xf32>
    %196 = arith.mulf %191, %195 : vector<8x64xf32>
    %197 = arith.truncf %196 : vector<8x64xf32> to vector<8x64xbf16>
    %cst_38 = arith.constant dense<0.000000e+00> : vector<8x256xf32>
    %198 = tpu.matmul %197, %6, %cst_38 {dimension_numbers = #tpu.dot_dimension_numbers<[1], [0], [0], [1], [0, 0, 1, 1], [], []>} : vector<8x64xbf16>, vector<64x256xbf16>, vector<8x256xf32> -> vector<8x256xf32>
    %199 = vector.extract_strided_slice %5 {offsets = [64, 0], sizes = [8, 256], strides = [1, 1]} : vector<72x256xf32> to vector<8x256xf32>
    %200 = arith.addf %198, %199 : vector<8x256xf32>
    %201 = arith.negf %200 : vector<8x256xf32>
    %202 = math.exp %201 : vector<8x256xf32>
    %cst_39 = arith.constant 1.000000e+00 : f32
    %203 = vector.broadcast %cst_39 : f32 to vector<8x256xf32>
    %204 = arith.addf %203, %202 : vector<8x256xf32>
    %205 = arith.divf %203, %204 : vector<8x256xf32>
    %cst_40 = arith.constant 2.000000e+00 : f32
    %206 = vector.broadcast %cst_40 : f32 to vector<8x256xf32>
    %207 = arith.mulf %206, %205 : vector<8x256xf32>
    %cst_41 = arith.constant 1.000000e+00 : f32
    %208 = vector.broadcast %cst_41 : f32 to vector<8x256xf32>
    %209 = arith.subf %207, %208 : vector<8x256xf32>
    %210 = arith.select %12, %209, %205 : vector<8x256xi1>, vector<8x256xf32>
    %211 = vector.extract_strided_slice %210 {offsets = [0, 0], sizes = [8, 64], strides = [1, 1]} : vector<8x256xf32> to vector<8x64xf32>
    %212 = vector.extract_strided_slice %210 {offsets = [0, 64], sizes = [8, 64], strides = [1, 1]} : vector<8x256xf32> to vector<8x64xf32>
    %213 = vector.extract_strided_slice %210 {offsets = [0, 128], sizes = [8, 64], strides = [1, 1]} : vector<8x256xf32> to vector<8x64xf32>
    %214 = vector.extract_strided_slice %210 {offsets = [0, 192], sizes = [8, 64], strides = [1, 1]} : vector<8x256xf32> to vector<8x64xf32>
    %215 = arith.mulf %212, %194 : vector<8x64xf32>
    %216 = arith.mulf %211, %213 : vector<8x64xf32>
    %217 = arith.addf %215, %216 : vector<8x64xf32>
    %218 = math.tanh %217 : vector<8x64xf32>
    %219 = arith.mulf %214, %218 : vector<8x64xf32>
    %c0_42 = arith.constant 0 : index
    %c0_43 = arith.constant 0 : index
    %220 = vector.load %arg4[%c0_42, %c0_43] : memref<1x64xf32, #tpu.memory_space<vmem>>, vector<1x64xf32>
    %221 = vector.broadcast %220 : vector<1x64xf32> to vector<8x64xf32>
    %222 = arith.mulf %219, %221 : vector<8x64xf32>
    %cst_44 = arith.constant dense<0.000000e+00> : vector<8xf32>
    %223 = vector.multi_reduction <add>, %222, %cst_44 [1] : vector<8x64xf32> to vector<8xf32>
    %224 = vector.shape_cast %223 : vector<8xf32> to vector<8x1xf32>
    %c0_45 = arith.constant 0 : index
    %c0_46 = arith.constant 0 : index
    %225 = vector.load %arg5[%c0_45, %c0_46] : memref<1x1xf32, #tpu.memory_space<vmem>>, vector<1x1xf32>
    %226 = vector.broadcast %225 : vector<1x1xf32> to vector<8x1xf32>
    %227 = arith.addf %224, %226 : vector<8x1xf32>
    %c0_47 = arith.constant 0 : index
    %c0_48 = arith.constant 0 : index
    %228 = vector.load %arg6[%c0_47, %c0_48] : memref<8x1xf32, #tpu.memory_space<vmem>>, vector<8x1xf32>
    tpu.vector_store %arg6[%c0_47, %c0_48], %227 {strides = array<i32>} : memref<8x1xf32, #tpu.memory_space<vmem>>, vector<8x1xf32>,
    return
  }
}

</mosaic_0001>

<llo_original>
// kernel: discriminator_forward.1
$region0: #{discriminator_forward.1}
  #allocation0 [shape = 'u32[]', space=smem, size = 0x4, offset = 0x4, fixed_abs, tag = 'smem constant byte address 0x4 - core index']
  #allocation1 [shape = 'u32[144,128]{1,0:T(1,128)}', space=vmem, size = 0x12000, scoped, tag = 'internal scratch']
  #allocation2 [shape = 'f32[1,1]{1,0:T(1,128)S(1)}', space=vmem, size = 0x200, scoped, tag = 'scoped memory for discriminator_forward.1']
  %s0 = inlined_call_operand.vmem [shape: bf16[72,34], index: 0, kind: input, shape index: {}]
  %s1 = inlined_call_operand.hbm [shape: bf16[34,256], index: 1, kind: input, shape index: {}]
  %s2 = inlined_call_operand.vmem [shape: f32[1,256], index: 2, kind: input, shape index: {}]
  %s3 = inlined_call_operand.vmem [shape: bf16[64,256], index: 3, kind: input, shape index: {}]
  %s4 = inlined_call_operand.vmem [shape: f32[1,64], index: 4, kind: input, shape index: {}]
  %s5 = inlined_call_operand.<no memory space> [shape: f32[1,1], index: 5, kind: input, shape index: {}]
  %s6 = inlined_call_operand.vmem [shape: f32[8,1], index: 6, kind: output, shape index: {}]
  %s7 = sld [smem:[#allocation0]]
  $region38: #{discriminator_forward.1} parent=0
    _
  %s9 = ssub.s32 1, %s7
  %s10 = scalar_select 0, %s9, %s7
  %v11 = vstv %s5
  %12 = vst [vmem:[#allocation2] sm:$0x1] %v11
  $region1: #{discriminator_forward.1} parent=0
    #allocation3 [shape = 'u8[20480]{0}', space=vmem, size = 0x5000, scoped, tag = 'input window, operand 1, single buffered']
    #allocation4 [shape = 's32[1]{0}', space=sflag, size = 0x4, scoped, tag = 'scoped memory for discriminator_forward.1']
    %13 = vsyncpa [#allocation4], 0
    // Predicated region
    $region2: #{discriminator_forward.1} parent=1 // pred_check
      _
    $region3: #{discriminator_forward.1} parent=1 // pred_check_branch
      %15 = sbr.rel (0) target = $region5
    $region4: #{discriminator_forward.1} parent=1 // pred_region
      _
    $region5: #{discriminator_forward.1} parent=1 // pred_fallthru
      _
    // Predicated region
    $region6: #{discriminator_forward.1} parent=1 // pred_check
      _
    $region7: #{discriminator_forward.1} parent=1 // pred_check_branch
      %17 = sbr.rel (0) target = $region9
    $region8: #{discriminator_forward.1} parent=1 // pred_region
      %s19 = ssub.s32 640, 640
      %20 = vsyncadd [#allocation4], %s19
      %s21 = sshll.u32 [#allocation3], 4
      %s22 = int_to_ptr.vmem [resolvable:$true] %s21
      %27 = dma.hbm_to_vmem [thread:$0]  %s1, 640, %s22, [#allocation4], 128, 128, 8
    $region9: #{discriminator_forward.1} parent=1 // pred_fallthru
      _
    // Predicated region
    $region10: #{discriminator_forward.1} parent=1 // pred_check
      _
    $region11: #{discriminator_forward.1} parent=1 // pred_check_branch
      %29 = sbr.rel (0) target = $region13
    $region12: #{discriminator_forward.1} parent=1 // pred_region
      _
    $region13: #{discriminator_forward.1} parent=1 // pred_fallthru
      _
    // Predicated region
    $region14: #{discriminator_forward.1} parent=1 // pred_check
      _
    $region15: #{discriminator_forward.1} parent=1 // pred_check_branch
      %31 = sbr.rel (0) target = $region17
    $region16: #{discriminator_forward.1} parent=1 // pred_region
      _
    $region17: #{discriminator_forward.1} parent=1 // pred_fallthru
      _
    // Predicated region
    $region18: #{discriminator_forward.1} parent=1 // pred_check
      _
    $region19: #{discriminator_forward.1} parent=1 // pred_check_branch
      %33 = sbr.rel (0) target = $region21
    $region20: #{discriminator_forward.1} parent=1 // pred_region
      _
    $region21: #{discriminator_forward.1} parent=1 // pred_fallthru
      _
    // Predicated region
    $region22: #{discriminator_forward.1} parent=1 // pred_check
      _
    $region23: #{discriminator_forward.1} parent=1 // pred_check_branch
      %35 = sbr.rel (0) target = $region25
    $region24: #{discriminator_forward.1} parent=1 // pred_region
      _
    $region25: #{discriminator_forward.1} parent=1 // pred_fallthru
      _
    // Predicated region
    $region26: #{discriminator_forward.1} parent=1 // pred_check
      _
    $region27: #{discriminator_forward.1} parent=1 // pred_check_branch
      %37 = sbr.rel (0) target = $region29
    $region28: #{discriminator_forward.1} parent=1 // pred_region
      %38 = dma.done [#allocation4], 640
    $region29: #{discriminator_forward.1} parent=1 // pred_fallthru
      _
    %v40 = vld [vmem:[%s0] sm:$0xf]
    %v41 = vld [vmem:[%s0 + $0x4] sm:$0xf]
    %v42 = vld [vmem:[%s0 + $0x8] sm:$0xf]
    %v43 = vld [vmem:[%s0 + $0xc] sm:$0xf]
    %v44 = vld [vmem:[%s0 + $0x10] sm:$0xf]
    %v45 = vld [vmem:[%s0 + $0x14] sm:$0xf]
    %v46 = vld [vmem:[%s0 + $0x18] sm:$0xf]
    %v47 = vld [vmem:[%s0 + $0x1c] sm:$0xf]
    %v48 = vld [vmem:[%s0 + $0x20] sm:$0xf]
    %v49 = vld [vmem:[#allocation3] sm:$0xff]
    %v50 = vld [vmem:[#allocation3 + $0x8] sm:$0xff]
    %v51 = vld [vmem:[#allocation3 + $0x10] sm:$0xff]
    %v52 = vld [vmem:[#allocation3 + $0x18] sm:$0xff]
    %v53 = vld [vmem:[#allocation3 + $0x20] sm:$0x11]
    %v54 = vld [vmem:[%s2] sm:$0x3]
    %v56 = vlaneseq
    %v57 = vshrl.u32 %v56, 7
    %v58 = vsub.s32 0, %v57
    %v59 = vrot.slane %v54, %v58
    %v60 = vlaneseq
    %v61 = vshrl.u32 %v60, 7
    %v62 = vsub.s32 1, %v61
    %v63 = vrot.slane %v54, %v62
    %v75 = vunpack.c.l.b16 %v40
    %v76 = vunpack.c.l.b16 %v41
    %v77 = vunpack.c.l.b16 %v42
    %v78 = vunpack.c.l.b16 %v43
    %v79 = vunpack.c.l.b16 %v44
    %v80 = vunpack.c.l.b16 %v45
    %v81 = vunpack.c.l.b16 %v46
    %v82 = vunpack.c.l.b16 %v47
    %v83 = vunpack.c.l.b16 %v48
    %v84 = vpack.c.b16 %v76, %v75
    %v85 = vpack.c.b16 %v78, %v77
    %v86 = vpack.c.b16 %v80, %v79
    %v87 = vpack.c.b16 %v82, %v81
    %v88 = vpack.c.b16 %v83, %v83
    %v94 = vunpack.c.l.b16 %v49
    %v95 = vunpack.c.h.b16 %v49
    %v96 = vunpack.c.l.b16 %v50
    %v97 = vunpack.c.h.b16 %v50
    %v98 = vunpack.c.l.b16 %v51
    %v99 = vunpack.c.h.b16 %v51
    %v100 = vunpack.c.l.b16 %v52
    %v101 = vunpack.c.h.b16 %v52
    %v102 = vunpack.c.l.b16 %v53
    %v103 = vunpack.c.h.b16 %v53
    %v104 = vpack.c.b16 %v96, %v94
    %v105 = vpack.c.b16 %v97, %v95
    %v106 = vpack.c.b16 %v100, %v98
    %v107 = vpack.c.b16 %v101, %v99
    %v108 = vpack.c.b16 %v102, %v102
    %v109 = vpack.c.b16 %v103, %v103
    %vm114 = vcmask 277504
    %v116 = vsel %vm114, %v84, 0
    %v119 = vsel %vm114, %v85, 0
    %v122 = vsel %vm114, %v86, 0
    %v125 = vsel %vm114, %v87, 0
    %v128 = vsel %vm114, %v88, 0
    %vm130 = vcmask 1040384
    %v132 = vsel %vm130, %v108, 0
    %v135 = vsel %vm130, %v109, 0
    %137 = vmatprep.subr.bf16.mxu0 %v105
    %138 = vmatpush1.bf16.msra.mxu0 %v104
    %139 = vmatprep.subr.bf16.mxu0 %v107
    %140 = vmatpush1.bf16.msra.mxu0 %v106
    %141 = vmatprep.subr.bf16.mxu0 %v135
    %142 = vmatpush1.bf16.msra.mxu0 %v132
    %143 = vmatprep.subr.bf16.mxu0 0
    %144 = vmatpush1.bf16.msra.mxu0 0
    %145 = vmatprep.subr.bf16.mxu0 0
    %146 = vmatpush1.bf16.msra.mxu0 0
    %147 = vmatprep.subr.bf16.mxu0 0
    %148 = vmatpush1.bf16.msra.mxu0 0
    %149 = vmatprep.subr.bf16.mxu0 0
    %150 = vmatpush1.bf16.msra.mxu0 0
    %151 = vmatprep.subr.bf16.mxu0 0
    %152 = vmatpush1.bf16.msra.mxu0 0
    %153 = vmatprep.subr.bf16.mxu0 0
    %154 = vmatpush1.bf16.msra.mxu0 0
    %155 = vmatprep.subr.bf16.mxu0 0
    %156 = vmatpush1.bf16.msra.mxu0 0
    %157 = vmatprep.subr.bf16.mxu0 0
    %158 = vmatpush1.bf16.msra.mxu0 0
    %159 = vmatprep.subr.bf16.mxu0 0
    %160 = vmatpush1.bf16.msra.mxu0 0
    %161 = vmatprep.subr.bf16.mxu0 0
    %162 = vmatpush1.bf16.msra.mxu0 0
    %163 = vmatprep.subr.bf16.mxu0 0
    %164 = vmatpush1.bf16.msra.mxu0 0
    %165 = vmatprep.subr.bf16.mxu0 0
    %166 = vmatpush1.bf16.msra.mxu0 0
    %167 = vmatprep.subr.bf16.mxu0 0
    %168 = vmatpush1.bf16.msra.mxu0 0
    %169 = vmatprep.mubr.bf16.mxu0 0
    %170 = vmatmul.mubr.bf16.gmra.mrb[0].mxu0 %v116
    %v171 = vpop.f32.mrb[0].mxu0
    %v172 = vadd.f32 %v59, %v171
    %v173 = vpop.f32.mrb[0].mxu0
    %v174 = vadd.f32 %v63, %v173
    %v175 = vpop.f32.mrb[0].mxu0
    %v176 = vadd.f32 %v59, %v175
    %v177 = vpop.f32.mrb[0].mxu0
    %v178 = vadd.f32 %v63, %v177
    %179 = vmatprep.mubr.bf16.mxu0 0
    %180 = vmatmul.mubr.bf16.gmra.mrb[0].mxu0 %v119
    %v181 = vpop.f32.mrb[0].mxu0
    %v182 = vadd.f32 %v59, %v181
    %v183 = vpop.f32.mrb[0].mxu0
    %v184 = vadd.f32 %v63, %v183
    %v185 = vpop.f32.mrb[0].mxu0
    %v186 = vadd.f32 %v59, %v185
    %v187 = vpop.f32.mrb[0].mxu0
    %v188 = vadd.f32 %v63, %v187
    %189 = vmatprep.mubr.bf16.mxu0 0
    %190 = vmatmul.mubr.bf16.gmra.mrb[0].mxu0 %v122
    %v191 = vpop.f32.mrb[0].mxu0
    %v192 = vadd.f32 %v59, %v191
    %v193 = vpop.f32.mrb[0].mxu0
    %v194 = vadd.f32 %v63, %v193
    %v195 = vpop.f32.mrb[0].mxu0
    %v196 = vadd.f32 %v59, %v195
    %v197 = vpop.f32.mrb[0].mxu0
    %v198 = vadd.f32 %v63, %v197
    %199 = vmatprep.mubr.bf16.mxu0 0
    %200 = vmatmul.mubr.bf16.gmra.mrb[0].mxu0 %v125
    %v201 = vpop.f32.mrb[0].mxu0
    %v202 = vadd.f32 %v59, %v201
    %v203 = vpop.f32.mrb[0].mxu0
    %v204 = vadd.f32 %v63, %v203
    %v205 = vpop.f32.mrb[0].mxu0
    %v206 = vadd.f32 %v59, %v205
    %v207 = vpop.f32.mrb[0].mxu0
    %v208 = vadd.f32 %v63, %v207
    %209 = vmatprep.mubr.bf16.mxu0 0
    %210 = vmatmul.mubr.bf16.gmra.mrb[0].mxu0 %v128
    %v211 = vpop.f32.mrb[0].mxu0
    %v212 = vadd.f32 %v59, %v211
    %v213 = vpop.f32.mrb[0].mxu0
    %v214 = vadd.f32 %v63, %v213
    %v215 = vpop.f32.mrb[0].mxu0
    %v216 = vpop.f32.mrb[0].mxu0
    %217 = vdwg.mxu0
    %v218 = vld [vmem:[%s3] sm:$0xff]
    %v219 = vld [vmem:[%s3 + $0x8] sm:$0xff]
    %v220 = vld [vmem:[%s3 + $0x10] sm:$0xff]
    %v221 = vld [vmem:[%s3 + $0x18] sm:$0xff]
    %v222 = vld [vmem:[%s3 + $0x20] sm:$0xff]
    %v223 = vld [vmem:[%s3 + $0x28] sm:$0xff]
    %v224 = vld [vmem:[%s3 + $0x30] sm:$0xff]
    %v225 = vld [vmem:[%s3 + $0x38] sm:$0xff]
    %v226 = vlaneseq
    %v227 = vand.u32 %v226, 127
    %v228 = vadd.s32 %v227, 128
    %vm229 = vcmp.ge.s32.totalorder %v227, 128
    %vm230 = vcmp.ge.s32.totalorder %v228, 128
    %vm231 = vcmp.lt.s32.totalorder %v227, 192
    %vm232 = vcmp.lt.s32.totalorder %v228, 192
    %vm233 = vmand %vm229, %vm231
    %vm234 = vmand %vm230, %vm232
    %vm235 = vcmp.lt.s32.totalorder %v227, 32
    %v236 = vsel %vm235, 1, 0
    %v237 = vcvt.s32.f32 %v236
    %v238 = vxor.u32 %v172, 2147483648
    %v239 = vxor.u32 %v174, 2147483648
    %v240 = vmul.f32 %v238, 1.442695
    %v241 = vpow.pop %v240
    %v242 = vmul.f32 %v239, 1.442695
    %v243 = vpow.pop %v242
    %v244 = vadd.f32 %v241, 1.0
    %v245 = vadd.f32 %v243, 1.0
    %v246 = vrcp.pop %v244
    %v247 = vmul.f32 1.0, %v246
    %v248 = vrcp.pop %v245
    %v249 = vmul.f32 1.0, %v248
    %v250 = vmul.f32 %v247, 2.0
    %v251 = vmul.f32 %v249, 2.0
    %v252 = vsub.f32 %v250, 1.0
    %v253 = vsub.f32 %v251, 1.0
    %v254 = vsel %vm233, %v252, %v247
    %v255 = vsel %vm234, %v253, %v249
    %v256 = vmul.f32 %v254, %v255
    %v257 = vmul.f32 %v256, %v237
    %v258 = vtanh.pop %v257
    %260 = vrot.lane.b32.xlu0 %v258, 64
    %v261 = vpop.permute.xlu0 %260
    %v263 = vmul.f32 %v255, %v261
    %v264 = vpack.c.bf16 %v263, %v263
    %266 = vrot.lane.b32.xlu0 %v264, 64
    %v267 = vpop.permute.xlu0 %266
    %v276 = vunpack.c.l.b16 %v218
    %v277 = vunpack.c.h.b16 %v218
    %v278 = vunpack.c.l.b16 %v219
    %v279 = vunpack.c.h.b16 %v219
    %v280 = vunpack.c.l.b16 %v220
    %v281 = vunpack.c.h.b16 %v220
    %v282 = vunpack.c.l.b16 %v221
    %v283 = vunpack.c.h.b16 %v221
    %v284 = vunpack.c.l.b16 %v222
    %v285 = vunpack.c.h.b16 %v222
    %v286 = vunpack.c.l.b16 %v223
    %v287 = vunpack.c.h.b16 %v223
    %v288 = vunpack.c.l.b16 %v224
    %v289 = vunpack.c.h.b16 %v224
    %v290 = vunpack.c.l.b16 %v225
    %v291 = vunpack.c.h.b16 %v225
    %v292 = vpack.c.b16 %v278, %v276
    %v293 = vpack.c.b16 %v279, %v277
    %v294 = vpack.c.b16 %v282, %v280
    %v295 = vpack.c.b16 %v283, %v281
    %v296 = vpack.c.b16 %v286, %v284
    %v297 = vpack.c.b16 %v287, %v285
    %v298 = vpack.c.b16 %v290, %v288
    %v299 = vpack.c.b16 %v291, %v289
    %vm308 = vcmask 523264
    %v310 = vsel %vm308, %v267, 0
    %312 = vmatprep.subr.bf16.mxu0 %v293
    %313 = vmatpush1.bf16.msra.mxu0 %v292
    %314 = vmatprep.subr.bf16.mxu0 %v295
    %315 = vmatpush1.bf16.msra.mxu0 %v294
    %316 = vmatprep.subr.bf16.mxu0 %v297
    %317 = vmatpush1.bf16.msra.mxu0 %v296
    %318 = vmatprep.subr.bf16.mxu0 %v299
    %319 = vmatpush1.bf16.msra.mxu0 %v298
    %320 = vmatprep.subr.bf16.mxu0 0
    %321 = vmatpush1.bf16.msra.mxu0 0
    %322 = vmatprep.subr.bf16.mxu0 0
    %323 = vmatpush1.bf16.msra.mxu0 0
    %324 = vmatprep.subr.bf16.mxu0 0
    %325 = vmatpush1.bf16.msra.mxu0 0
    %326 = vmatprep.subr.bf16.mxu0 0
    %327 = vmatpush1.bf16.msra.mxu0 0
    %328 = vmatprep.subr.bf16.mxu0 0
    %329 = vmatpush1.bf16.msra.mxu0 0
    %330 = vmatprep.subr.bf16.mxu0 0
    %331 = vmatpush1.bf16.msra.mxu0 0
    %332 = vmatprep.subr.bf16.mxu0 0
    %333 = vmatpush1.bf16.msra.mxu0 0
    %334 = vmatprep.subr.bf16.mxu0 0
    %335 = vmatpush1.bf16.msra.mxu0 0
    %336 = vmatprep.subr.bf16.mxu0 0
    %337 = vmatpush1.bf16.msra.mxu0 0
    %338 = vmatprep.subr.bf16.mxu0 0
    %339 = vmatpush1.bf16.msra.mxu0 0
    %340 = vmatprep.subr.bf16.mxu0 0
    %341 = vmatpush1.bf16.msra.mxu0 0
    %342 = vmatprep.subr.bf16.mxu0 0
    %343 = vmatpush1.bf16.msra.mxu0 0
    %344 = vmatprep.mubr.bf16.mxu0 0
    %345 = vmatmul.mubr.bf16.gmra.mrb[0].mxu0 %v310
    %v346 = vpop.f32.mrb[0].mxu0
    %v347 = vadd.f32 %v176, %v346
    %v348 = vpop.f32.mrb[0].mxu0
    %v349 = vadd.f32 %v178, %v348
    %v350 = vpop.f32.mrb[0].mxu0
    %v351 = vpop.f32.mrb[0].mxu0
    %352 = vdwg.mxu0
    %v353 = vxor.u32 %v347, 2147483648
    %v354 = vxor.u32 %v349, 2147483648
    %v355 = vmul.f32 %v353, 1.442695
    %v356 = vpow.pop %v355
    %v357 = vmul.f32 %v354, 1.442695
    %v358 = vpow.pop %v357
    %v359 = vadd.f32 %v356, 1.0
    %v360 = vadd.f32 %v358, 1.0
    %v361 = vrcp.pop %v359
    %v362 = vmul.f32 1.0, %v361
    %v363 = vrcp.pop %v360
    %v364 = vmul.f32 1.0, %v363
    %v365 = vmul.f32 %v362, 2.0
    %v366 = vmul.f32 %v364, 2.0
    %v367 = vsub.f32 %v365, 1.0
    %v368 = vsub.f32 %v366, 1.0
    %v369 = vsel %vm233, %v367, %v362
    %v370 = vsel %vm234, %v368, %v364
    %372 = vrot.lane.b32.xlu0 %v257, 64
    %v373 = vpop.permute.xlu0 %372
    %v375 = vmul.f32 %v369, %v373
    %v376 = vmul.f32 %v369, %v370
    %378 = vrot.lane.b32.xlu0 %v376, 64
    %v379 = vpop.permute.xlu0 %378
    %v381 = vadd.f32 %v375, %v379
    %v382 = vtanh.pop %v381
    %v383 = vmul.f32 %v370, %v382
    %v384 = vpack.c.bf16 %v383, %v383
    %386 = vrot.lane.b32.xlu0 %v384, 64
    %v387 = vpop.permute.xlu0 %386
    %v389 = vsel %vm308, %v387, 0
    %391 = vmatprep.subr.bf16.mxu0 %v293
    %392 = vmatpush1.bf16.msra.mxu0 %v292
    %393 = vmatprep.subr.bf16.mxu0 %v295
    %394 = vmatpush1.bf16.msra.mxu0 %v294
    %395 = vmatprep.subr.bf16.mxu0 %v297
    %396 = vmatpush1.bf16.msra.mxu0 %v296
    %397 = vmatprep.subr.bf16.mxu0 %v299
    %398 = vmatpush1.bf16.msra.mxu0 %v298
    %399 = vmatprep.subr.bf16.mxu0 0
    %400 = vmatpush1.bf16.msra.mxu0 0
    %401 = vmatprep.subr.bf16.mxu0 0
    %402 = vmatpush1.bf16.msra.mxu0 0
    %403 = vmatprep.subr.bf16.mxu0 0
    %404 = vmatpush1.bf16.msra.mxu0 0
    %405 = vmatprep.subr.bf16.mxu0 0
    %406 = vmatpush1.bf16.msra.mxu0 0
    %407 = vmatprep.subr.bf16.mxu0 0
    %408 = vmatpush1.bf16.msra.mxu0 0
    %409 = vmatprep.subr.bf16.mxu0 0
    %410 = vmatpush1.bf16.msra.mxu0 0
    %411 = vmatprep.subr.bf16.mxu0 0
    %412 = vmatpush1.bf16.msra.mxu0 0
    %413 = vmatprep.subr.bf16.mxu0 0
    %414 = vmatpush1.bf16.msra.mxu0 0
    %415 = vmatprep.subr.bf16.mxu0 0
    %416 = vmatpush1.bf16.msra.mxu0 0
    %417 = vmatprep.subr.bf16.mxu0 0
    %418 = vmatpush1.bf16.msra.mxu0 0
    %419 = vmatprep.subr.bf16.mxu0 0
    %420 = vmatpush1.bf16.msra.mxu0 0
    %421 = vmatprep.subr.bf16.mxu0 0
    %422 = vmatpush1.bf16.msra.mxu0 0
    %423 = vmatprep.mubr.bf16.mxu0 0
    %424 = vmatmul.mubr.bf16.gmra.mrb[0].mxu0 %v389
    %v425 = vpop.f32.mrb[0].mxu0
    %v426 = vadd.f32 %v182, %v425
    %v427 = vpop.f32.mrb[0].mxu0
    %v428 = vadd.f32 %v184, %v427
    %v429 = vpop.f32.mrb[0].mxu0
    %v430 = vpop.f32.mrb[0].mxu0
    %431 = vdwg.mxu0
    %v432 = vxor.u32 %v426, 2147483648
    %v433 = vxor.u32 %v428, 2147483648
    %v434 = vmul.f32 %v432, 1.442695
    %v435 = vpow.pop %v434
    %v436 = vmul.f32 %v433, 1.442695
    %v437 = vpow.pop %v436
    %v438 = vadd.f32 %v435, 1.0
    %v439 = vadd.f32 %v437, 1.0
    %v440 = vrcp.pop %v438
    %v441 = vmul.f32 1.0, %v440
    %v442 = vrcp.pop %v439
    %v443 = vmul.f32 1.0, %v442
    %v444 = vmul.f32 %v441, 2.0
    %v445 = vmul.f32 %v443, 2.0
    %v446 = vsub.f32 %v444, 1.0
    %v447 = vsub.f32 %v445, 1.0
    %v448 = vsel %vm233, %v446, %v441
    %v449 = vsel %vm234, %v447, %v443
    %v450 = vmul.f32 %v448, %v381
    %v451 = vmul.f32 %v448, %v449
    %453 = vrot.lane.b32.xlu0 %v451, 64
    %v454 = vpop.permute.xlu0 %453
    %v456 = vadd.f32 %v450, %v454
    %v457 = vtanh.pop %v456
    %v458 = vmul.f32 %v449, %v457
    %v459 = vpack.c.bf16 %v458, %v458
    %461 = vrot.lane.b32.xlu0 %v459, 64
    %v462 = vpop.permute.xlu0 %461
    %v464 = vsel %vm308, %v462, 0
    %466 = vmatprep.subr.bf16.mxu0 %v293
    %467 = vmatpush1.bf16.msra.mxu0 %v292
    %468 = vmatprep.subr.bf16.mxu0 %v295
    %469 = vmatpush1.bf16.msra.mxu0 %v294
    %470 = vmatprep.subr.bf16.mxu0 %v297
    %471 = vmatpush1.bf16.msra.mxu0 %v296
    %472 = vmatprep.subr.bf16.mxu0 %v299
    %473 = vmatpush1.bf16.msra.mxu0 %v298
    %474 = vmatprep.subr.bf16.mxu0 0
    %475 = vmatpush1.bf16.msra.mxu0 0
    %476 = vmatprep.subr.bf16.mxu0 0
    %477 = vmatpush1.bf16.msra.mxu0 0
    %478 = vmatprep.subr.bf16.mxu0 0
    %479 = vmatpush1.bf16.msra.mxu0 0
    %480 = vmatprep.subr.bf16.mxu0 0
    %481 = vmatpush1.bf16.msra.mxu0 0
    %482 = vmatprep.subr.bf16.mxu0 0
    %483 = vmatpush1.bf16.msra.mxu0 0
    %484 = vmatprep.subr.bf16.mxu0 0
    %485 = vmatpush1.bf16.msra.mxu0 0
    %486 = vmatprep.subr.bf16.mxu0 0
    %487 = vmatpush1.bf16.msra.mxu0 0
    %488 = vmatprep.subr.bf16.mxu0 0
    %489 = vmatpush1.bf16.msra.mxu0 0
    %490 = vmatprep.subr.bf16.mxu0 0
    %491 = vmatpush1.bf16.msra.mxu0 0
    %492 = vmatprep.subr.bf16.mxu0 0
    %493 = vmatpush1.bf16.msra.mxu0 0
    %494 = vmatprep.subr.bf16.mxu0 0
    %495 = vmatpush1.bf16.msra.mxu0 0
    %496 = vmatprep.subr.bf16.mxu0 0
    %497 = vmatpush1.bf16.msra.mxu0 0
    %498 = vmatprep.mubr.bf16.mxu0 0
    %499 = vmatmul.mubr.bf16.gmra.mrb[0].mxu0 %v464
    %v500 = vpop.f32.mrb[0].mxu0
    %v501 = vadd.f32 %v186, %v500
    %v502 = vpop.f32.mrb[0].mxu0
    %v503 = vadd.f32 %v188, %v502
    %v504 = vpop.f32.mrb[0].mxu0
    %v505 = vpop.f32.mrb[0].mxu0
    %506 = vdwg.mxu0
    %v507 = vxor.u32 %v501, 2147483648
    %v508 = vxor.u32 %v503, 2147483648
    %v509 = vmul.f32 %v507, 1.442695
    %v510 = vpow.pop %v509
    %v511 = vmul.f32 %v508, 1.442695
    %v512 = vpow.pop %v511
    %v513 = vadd.f32 %v510, 1.0
    %v514 = vadd.f32 %v512, 1.0
    %v515 = vrcp.pop %v513
    %v516 = vmul.f32 1.0, %v515
    %v517 = vrcp.pop %v514
    %v518 = vmul.f32 1.0, %v517
    %v519 = vmul.f32 %v516, 2.0
    %v520 = vmul.f32 %v518, 2.0
    %v521 = vsub.f32 %v519, 1.0
    %v522 = vsub.f32 %v520, 1.0
    %v523 = vsel %vm233, %v521, %v516
    %v524 = vsel %vm234, %v522, %v518
    %v525 = vmul.f32 %v523, %v456
    %v526 = vmul.f32 %v523, %v524
    %528 = vrot.lane.b32.xlu0 %v526, 64
    %v529 = vpop.permute.xlu0 %528
    %v531 = vadd.f32 %v525, %v529
    %v532 = vtanh.pop %v531
    %v533 = vmul.f32 %v524, %v532
    %v534 = vpack.c.bf16 %v533, %v533
    %536 = vrot.lane.b32.xlu0 %v534, 64
    %v537 = vpop.permute.xlu0 %536
    %v539 = vsel %vm308, %v537, 0
    %541 = vmatprep.subr.bf16.mxu0 %v293
    %542 = vmatpush1.bf16.msra.mxu0 %v292
    %543 = vmatprep.subr.bf16.mxu0 %v295
    %544 = vmatpush1.bf16.msra.mxu0 %v294
    %545 = vmatprep.subr.bf16.mxu0 %v297
    %546 = vmatpush1.bf16.msra.mxu0 %v296
    %547 = vmatprep.subr.bf16.mxu0 %v299
    %548 = vmatpush1.bf16.msra.mxu0 %v298
    %549 = vmatprep.subr.bf16.mxu0 0
    %550 = vmatpush1.bf16.msra.mxu0 0
    %551 = vmatprep.subr.bf16.mxu0 0
    %552 = vmatpush1.bf16.msra.mxu0 0
    %553 = vmatprep.subr.bf16.mxu0 0
    %554 = vmatpush1.bf16.msra.mxu0 0
    %555 = vmatprep.subr.bf16.mxu0 0
    %556 = vmatpush1.bf16.msra.mxu0 0
    %557 = vmatprep.subr.bf16.mxu0 0
    %558 = vmatpush1.bf16.msra.mxu0 0
    %559 = vmatprep.subr.bf16.mxu0 0
    %560 = vmatpush1.bf16.msra.mxu0 0
    %561 = vmatprep.subr.bf16.mxu0 0
    %562 = vmatpush1.bf16.msra.mxu0 0
    %563 = vmatprep.subr.bf16.mxu0 0
    %564 = vmatpush1.bf16.msra.mxu0 0
    %565 = vmatprep.subr.bf16.mxu0 0
    %566 = vmatpush1.bf16.msra.mxu0 0
    %567 = vmatprep.subr.bf16.mxu0 0
    %568 = vmatpush1.bf16.msra.mxu0 0
    %569 = vmatprep.subr.bf16.mxu0 0
    %570 = vmatpush1.bf16.msra.mxu0 0
    %571 = vmatprep.subr.bf16.mxu0 0
    %572 = vmatpush1.bf16.msra.mxu0 0
    %573 = vmatprep.mubr.bf16.mxu0 0
    %574 = vmatmul.mubr.bf16.gmra.mrb[0].mxu0 %v539
    %v575 = vpop.f32.mrb[0].mxu0
    %v576 = vadd.f32 %v192, %v575
    %v577 = vpop.f32.mrb[0].mxu0
    %v578 = vadd.f32 %v194, %v577
    %v579 = vpop.f32.mrb[0].mxu0
    %v580 = vpop.f32.mrb[0].mxu0
    %581 = vdwg.mxu0
    %v582 = vxor.u32 %v576, 2147483648
    %v583 = vxor.u32 %v578, 2147483648
    %v584 = vmul.f32 %v582, 1.442695
    %v585 = vpow.pop %v584
    %v586 = vmul.f32 %v583, 1.442695
    %v587 = vpow.pop %v586
    %v588 = vadd.f32 %v585, 1.0
    %v589 = vadd.f32 %v587, 1.0
    %v590 = vrcp.pop %v588
    %v591 = vmul.f32 1.0, %v590
    %v592 = vrcp.pop %v589
    %v593 = vmul.f32 1.0, %v592
    %v594 = vmul.f32 %v591, 2.0
    %v595 = vmul.f32 %v593, 2.0
    %v596 = vsub.f32 %v594, 1.0
    %v597 = vsub.f32 %v595, 1.0
    %v598 = vsel %vm233, %v596, %v591
    %v599 = vsel %vm234, %v597, %v593
    %v600 = vmul.f32 %v598, %v531
    %v601 = vmul.f32 %v598, %v599
    %603 = vrot.lane.b32.xlu0 %v601, 64
    %v604 = vpop.permute.xlu0 %603
    %v606 = vadd.f32 %v600, %v604
    %v607 = vtanh.pop %v606
    %v608 = vmul.f32 %v599, %v607
    %v609 = vpack.c.bf16 %v608, %v608
    %611 = vrot.lane.b32.xlu0 %v609, 64
    %v612 = vpop.permute.xlu0 %611
    %v614 = vsel %vm308, %v612, 0
    %616 = vmatprep.subr.bf16.mxu0 %v293
    %617 = vmatpush1.bf16.msra.mxu0 %v292
    %618 = vmatprep.subr.bf16.mxu0 %v295
    %619 = vmatpush1.bf16.msra.mxu0 %v294
    %620 = vmatprep.subr.bf16.mxu0 %v297
    %621 = vmatpush1.bf16.msra.mxu0 %v296
    %622 = vmatprep.subr.bf16.mxu0 %v299
    %623 = vmatpush1.bf16.msra.mxu0 %v298
    %624 = vmatprep.subr.bf16.mxu0 0
    %625 = vmatpush1.bf16.msra.mxu0 0
    %626 = vmatprep.subr.bf16.mxu0 0
    %627 = vmatpush1.bf16.msra.mxu0 0
    %628 = vmatprep.subr.bf16.mxu0 0
    %629 = vmatpush1.bf16.msra.mxu0 0
    %630 = vmatprep.subr.bf16.mxu0 0
    %631 = vmatpush1.bf16.msra.mxu0 0
    %632 = vmatprep.subr.bf16.mxu0 0
    %633 = vmatpush1.bf16.msra.mxu0 0
    %634 = vmatprep.subr.bf16.mxu0 0
    %635 = vmatpush1.bf16.msra.mxu0 0
    %636 = vmatprep.subr.bf16.mxu0 0
    %637 = vmatpush1.bf16.msra.mxu0 0
    %638 = vmatprep.subr.bf16.mxu0 0
    %639 = vmatpush1.bf16.msra.mxu0 0
    %640 = vmatprep.subr.bf16.mxu0 0
    %641 = vmatpush1.bf16.msra.mxu0 0
    %642 = vmatprep.subr.bf16.mxu0 0
    %643 = vmatpush1.bf16.msra.mxu0 0
    %644 = vmatprep.subr.bf16.mxu0 0
    %645 = vmatpush1.bf16.msra.mxu0 0
    %646 = vmatprep.subr.bf16.mxu0 0
    %647 = vmatpush1.bf16.msra.mxu0 0
    %648 = vmatprep.mubr.bf16.mxu0 0
    %649 = vmatmul.mubr.bf16.gmra.mrb[0].mxu0 %v614
    %v650 = vpop.f32.mrb[0].mxu0
    %v651 = vadd.f32 %v196, %v650
    %v652 = vpop.f32.mrb[0].mxu0
    %v653 = vadd.f32 %v198, %v652
    %v654 = vpop.f32.mrb[0].mxu0
    %v655 = vpop.f32.mrb[0].mxu0
    %656 = vdwg.mxu0
    %v657 = vxor.u32 %v651, 2147483648
    %v658 = vxor.u32 %v653, 2147483648
    %v659 = vmul.f32 %v657, 1.442695
    %v660 = vpow.pop %v659
    %v661 = vmul.f32 %v658, 1.442695
    %v662 = vpow.pop %v661
    %v663 = vadd.f32 %v660, 1.0
    %v664 = vadd.f32 %v662, 1.0
    %v665 = vrcp.pop %v663
    %v666 = vmul.f32 1.0, %v665
    %v667 = vrcp.pop %v664
    %v668 = vmul.f32 1.0, %v667
    %v669 = vmul.f32 %v666, 2.0
    %v670 = vmul.f32 %v668, 2.0
    %v671 = vsub.f32 %v669, 1.0
    %v672 = vsub.f32 %v670, 1.0
    %v673 = vsel %vm233, %v671, %v666
    %v674 = vsel %vm234, %v672, %v668
    %v675 = vmul.f32 %v673, %v606
    %v676 = vmul.f32 %v673, %v674
    %678 = vrot.lane.b32.xlu0 %v676, 64
    %v679 = vpop.permute.xlu0 %678
    %v681 = vadd.f32 %v675, %v679
    %v682 = vtanh.pop %v681
    %v683 = vmul.f32 %v674, %v682
    %v684 = vpack.c.bf16 %v683, %v683
    %686 = vrot.lane.b32.xlu0 %v684, 64
    %v687 = vpop.permute.xlu0 %686
    %v689 = vsel %vm308, %v687, 0
    %691 = vmatprep.subr.bf16.mxu0 %v293
    %692 = vmatpush1.bf16.msra.mxu0 %v292
    %693 = vmatprep.subr.bf16.mxu0 %v295
    %694 = vmatpush1.bf16.msra.mxu0 %v294
    %695 = vmatprep.subr.bf16.mxu0 %v297
    %696 = vmatpush1.bf16.msra.mxu0 %v296
    %697 = vmatprep.subr.bf16.mxu0 %v299
    %698 = vmatpush1.bf16.msra.mxu0 %v298
    %699 = vmatprep.subr.bf16.mxu0 0
    %700 = vmatpush1.bf16.msra.mxu0 0
    %701 = vmatprep.subr.bf16.mxu0 0
    %702 = vmatpush1.bf16.msra.mxu0 0
    %703 = vmatprep.subr.bf16.mxu0 0
    %704 = vmatpush1.bf16.msra.mxu0 0
    %705 = vmatprep.subr.bf16.mxu0 0
    %706 = vmatpush1.bf16.msra.mxu0 0
    %707 = vmatprep.subr.bf16.mxu0 0
    %708 = vmatpush1.bf16.msra.mxu0 0
    %709 = vmatprep.subr.bf16.mxu0 0
    %710 = vmatpush1.bf16.msra.mxu0 0
    %711 = vmatprep.subr.bf16.mxu0 0
    %712 = vmatpush1.bf16.msra.mxu0 0
    %713 = vmatprep.subr.bf16.mxu0 0
    %714 = vmatpush1.bf16.msra.mxu0 0
    %715 = vmatprep.subr.bf16.mxu0 0
    %716 = vmatpush1.bf16.msra.mxu0 0
    %717 = vmatprep.subr.bf16.mxu0 0
    %718 = vmatpush1.bf16.msra.mxu0 0
    %719 = vmatprep.subr.bf16.mxu0 0
    %720 = vmatpush1.bf16.msra.mxu0 0
    %721 = vmatprep.subr.bf16.mxu0 0
    %722 = vmatpush1.bf16.msra.mxu0 0
    %723 = vmatprep.mubr.bf16.mxu0 0
    %724 = vmatmul.mubr.bf16.gmra.mrb[0].mxu0 %v689
    %v725 = vpop.f32.mrb[0].mxu0
    %v726 = vadd.f32 %v202, %v725
    %v727 = vpop.f32.mrb[0].mxu0
    %v728 = vadd.f32 %v204, %v727
    %v729 = vpop.f32.mrb[0].mxu0
    %v730 = vpop.f32.mrb[0].mxu0
    %731 = vdwg.mxu0
    %v732 = vxor.u32 %v726, 2147483648
    %v733 = vxor.u32 %v728, 2147483648
    %v734 = vmul.f32 %v732, 1.442695
    %v735 = vpow.pop %v734
    %v736 = vmul.f32 %v733, 1.442695
    %v737 = vpow.pop %v736
    %v738 = vadd.f32 %v735, 1.0
    %v739 = vadd.f32 %v737, 1.0
    %v740 = vrcp.pop %v738
    %v741 = vmul.f32 1.0, %v740
    %v742 = vrcp.pop %v739
    %v743 = vmul.f32 1.0, %v742
    %v744 = vmul.f32 %v741, 2.0
    %v745 = vmul.f32 %v743, 2.0
    %v746 = vsub.f32 %v744, 1.0
    %v747 = vsub.f32 %v745, 1.0
    %v748 = vsel %vm233, %v746, %v741
    %v749 = vsel %vm234, %v747, %v743
    %v750 = vmul.f32 %v748, %v681
    %v751 = vmul.f32 %v748, %v749
    %753 = vrot.lane.b32.xlu0 %v751, 64
    %v754 = vpop.permute.xlu0 %753
    %v756 = vadd.f32 %v750, %v754
    %v757 = vtanh.pop %v756
    %v758 = vmul.f32 %v749, %v757
    %v759 = vpack.c.bf16 %v758, %v758
    %761 = vrot.lane.b32.xlu0 %v759, 64
    %v762 = vpop.permute.xlu0 %761
    %v764 = vsel %vm308, %v762, 0
    %766 = vmatprep.subr.bf16.mxu0 %v293
    %767 = vmatpush1.bf16.msra.mxu0 %v292
    %768 = vmatprep.subr.bf16.mxu0 %v295
    %769 = vmatpush1.bf16.msra.mxu0 %v294
    %770 = vmatprep.subr.bf16.mxu0 %v297
    %771 = vmatpush1.bf16.msra.mxu0 %v296
    %772 = vmatprep.subr.bf16.mxu0 %v299
    %773 = vmatpush1.bf16.msra.mxu0 %v298
    %774 = vmatprep.subr.bf16.mxu0 0
    %775 = vmatpush1.bf16.msra.mxu0 0
    %776 = vmatprep.subr.bf16.mxu0 0
    %777 = vmatpush1.bf16.msra.mxu0 0
    %778 = vmatprep.subr.bf16.mxu0 0
    %779 = vmatpush1.bf16.msra.mxu0 0
    %780 = vmatprep.subr.bf16.mxu0 0
    %781 = vmatpush1.bf16.msra.mxu0 0
    %782 = vmatprep.subr.bf16.mxu0 0
    %783 = vmatpush1.bf16.msra.mxu0 0
    %784 = vmatprep.subr.bf16.mxu0 0
    %785 = vmatpush1.bf16.msra.mxu0 0
    %786 = vmatprep.subr.bf16.mxu0 0
    %787 = vmatpush1.bf16.msra.mxu0 0
    %788 = vmatprep.subr.bf16.mxu0 0
    %789 = vmatpush1.bf16.msra.mxu0 0
    %790 = vmatprep.subr.bf16.mxu0 0
    %791 = vmatpush1.bf16.msra.mxu0 0
    %792 = vmatprep.subr.bf16.mxu0 0
    %793 = vmatpush1.bf16.msra.mxu0 0
    %794 = vmatprep.subr.bf16.mxu0 0
    %795 = vmatpush1.bf16.msra.mxu0 0
    %796 = vmatprep.subr.bf16.mxu0 0
    %797 = vmatpush1.bf16.msra.mxu0 0
    %798 = vmatprep.mubr.bf16.mxu0 0
    %799 = vmatmul.mubr.bf16.gmra.mrb[0].mxu0 %v764
    %v800 = vpop.f32.mrb[0].mxu0
    %v801 = vadd.f32 %v206, %v800
    %v802 = vpop.f32.mrb[0].mxu0
    %v803 = vadd.f32 %v208, %v802
    %v804 = vpop.f32.mrb[0].mxu0
    %v805 = vpop.f32.mrb[0].mxu0
    %806 = vdwg.mxu0
    %v807 = vxor.u32 %v801, 2147483648
    %v808 = vxor.u32 %v803, 2147483648
    %v809 = vmul.f32 %v807, 1.442695
    %v810 = vpow.pop %v809
    %v811 = vmul.f32 %v808, 1.442695
    %v812 = vpow.pop %v811
    %v813 = vadd.f32 %v810, 1.0
    %v814 = vadd.f32 %v812, 1.0
    %v815 = vrcp.pop %v813
    %v816 = vmul.f32 1.0, %v815
    %v817 = vrcp.pop %v814
    %v818 = vmul.f32 1.0, %v817
    %v819 = vmul.f32 %v816, 2.0
    %v820 = vmul.f32 %v818, 2.0
    %v821 = vsub.f32 %v819, 1.0
    %v822 = vsub.f32 %v820, 1.0
    %v823 = vsel %vm233, %v821, %v816
    %v824 = vsel %vm234, %v822, %v818
    %v825 = vmul.f32 %v823, %v756
    %v826 = vmul.f32 %v823, %v824
    %828 = vrot.lane.b32.xlu0 %v826, 64
    %v829 = vpop.permute.xlu0 %828
    %v831 = vadd.f32 %v825, %v829
    %v832 = vtanh.pop %v831
    %v833 = vmul.f32 %v824, %v832
    %v834 = vpack.c.bf16 %v833, %v833
    %836 = vrot.lane.b32.xlu0 %v834, 64
    %v837 = vpop.permute.xlu0 %836
    %v839 = vsel %vm308, %v837, 0
    %841 = vmatprep.subr.bf16.mxu0 %v293
    %842 = vmatpush1.bf16.msra.mxu0 %v292
    %843 = vmatprep.subr.bf16.mxu0 %v295
    %844 = vmatpush1.bf16.msra.mxu0 %v294
    %845 = vmatprep.subr.bf16.mxu0 %v297
    %846 = vmatpush1.bf16.msra.mxu0 %v296
    %847 = vmatprep.subr.bf16.mxu0 %v299
    %848 = vmatpush1.bf16.msra.mxu0 %v298
    %849 = vmatprep.subr.bf16.mxu0 0
    %850 = vmatpush1.bf16.msra.mxu0 0
    %851 = vmatprep.subr.bf16.mxu0 0
    %852 = vmatpush1.bf16.msra.mxu0 0
    %853 = vmatprep.subr.bf16.mxu0 0
    %854 = vmatpush1.bf16.msra.mxu0 0
    %855 = vmatprep.subr.bf16.mxu0 0
    %856 = vmatpush1.bf16.msra.mxu0 0
    %857 = vmatprep.subr.bf16.mxu0 0
    %858 = vmatpush1.bf16.msra.mxu0 0
    %859 = vmatprep.subr.bf16.mxu0 0
    %860 = vmatpush1.bf16.msra.mxu0 0
    %861 = vmatprep.subr.bf16.mxu0 0
    %862 = vmatpush1.bf16.msra.mxu0 0
    %863 = vmatprep.subr.bf16.mxu0 0
    %864 = vmatpush1.bf16.msra.mxu0 0
    %865 = vmatprep.subr.bf16.mxu0 0
    %866 = vmatpush1.bf16.msra.mxu0 0
    %867 = vmatprep.subr.bf16.mxu0 0
    %868 = vmatpush1.bf16.msra.mxu0 0
    %869 = vmatprep.subr.bf16.mxu0 0
    %870 = vmatpush1.bf16.msra.mxu0 0
    %871 = vmatprep.subr.bf16.mxu0 0
    %872 = vmatpush1.bf16.msra.mxu0 0
    %873 = vmatprep.mubr.bf16.mxu0 0
    %874 = vmatmul.mubr.bf16.gmra.mrb[0].mxu0 %v839
    %v875 = vpop.f32.mrb[0].mxu0
    %v876 = vadd.f32 %v212, %v875
    %v877 = vpop.f32.mrb[0].mxu0
    %v878 = vadd.f32 %v214, %v877
    %v879 = vpop.f32.mrb[0].mxu0
    %v880 = vpop.f32.mrb[0].mxu0
    %881 = vdwg.mxu0
    %v882 = vxor.u32 %v876, 2147483648
    %v883 = vxor.u32 %v878, 2147483648
    %v884 = vmul.f32 %v882, 1.442695
    %v885 = vpow.pop %v884
    %v886 = vmul.f32 %v883, 1.442695
    %v887 = vpow.pop %v886
    %v888 = vadd.f32 %v885, 1.0
    %v889 = vadd.f32 %v887, 1.0
    %v890 = vrcp.pop %v888
    %v891 = vmul.f32 1.0, %v890
    %v892 = vrcp.pop %v889
    %v893 = vmul.f32 1.0, %v892
    %v894 = vmul.f32 %v891, 2.0
    %v895 = vmul.f32 %v893, 2.0
    %v896 = vsub.f32 %v894, 1.0
    %v897 = vsub.f32 %v895, 1.0
    %v898 = vsel %vm233, %v896, %v891
    %v899 = vsel %vm234, %v897, %v893
    %v900 = vmul.f32 %v898, %v831
    %v901 = vmul.f32 %v898, %v899
    %903 = vrot.lane.b32.xlu0 %v901, 64
    %v904 = vpop.permute.xlu0 %903
    %v906 = vadd.f32 %v900, %v904
    %v907 = vtanh.pop %v906
    %v908 = vmul.f32 %v899, %v907
    %v909 = vld [vmem:[%s4] sm:$0x1]
    %v911 = vlaneseq
    %v912 = vshrl.u32 %v911, 7
    %v913 = vsub.s32 0, %v912
    %v914 = vrot.slane %v909, %v913
    %915 = vrot.lane.b32.xlu0 %v914, 64
    %v916 = vpop.permute.xlu0 %915
    %v918 = vmul.f32 %v908, %v916
    %920 = vrot.lane.b32.xlu0 %v918, 64
    %v921 = vpop.permute.xlu0 %920
    %v923 = vsel %vm308, %v921, 0.0
    %924 = vadd.xlane.f32.xlu0 %v923
    %v925 = vpop.xlane.xlu0 %924
    %v926 = vld [vmem:[#allocation2] sm:$0x1]
    %v928 = vlaneseq
    %v929 = vshrl.u32 %v928, 7
    %v930 = vsub.s32 0, %v929
    %v931 = vrot.slane %v926, %v930
    %v933 = vadd.f32 %v925, %v931
    %vm934 = vcmask 7168
    %935 = vst.msk [vmem:[%s6] sm:$0xff] %vm934, %v933
    // Predicated region
    $region30: #{discriminator_forward.1} parent=1 // pred_check
      _
    $region31: #{discriminator_forward.1} parent=1 // pred_check_branch
      %937 = sbr.rel (0) target = $region33
    $region32: #{discriminator_forward.1} parent=1 // pred_region
      _
    $region33: #{discriminator_forward.1} parent=1 // pred_fallthru
      _
    // Predicated region
    $region34: #{discriminator_forward.1} parent=1 // pred_check
      _
    $region35: #{discriminator_forward.1} parent=1 // pred_check_branch
      %939 = sbr.rel (0) target = $region37
    $region36: #{discriminator_forward.1} parent=1 // pred_region
      _
    $region37: #{discriminator_forward.1} parent=1 // pred_fallthru
      _
    %940 = vsyncpa [#allocation4], 1

</llo_original>
